<compile_context>
chip_gen: v7x
topology: tpu7x:2x2x1
jax: 0.10.0
libtpu: 0.0.40
codegen_flags: <defaults>
</compile_context>

<pallas_src>
import functools

import jax
import jax.numpy as jnp
from jax.experimental import pallas as pl
from jax.experimental.pallas import tpu as pltpu


def conv1x1_stats_kernel(x_ref, w_ref, y_ref, stats_ref, *, hw, thw):
    # x_ref: (1, Cin, thw)   w_ref: (Cout, Cin)
    # y_ref: (1, Cout, thw)  (bf16)
    # stats_ref: (1, Cout, 128)  lane 0 = per-channel sum, lanes>=1 = sum(y^2)
    y = jnp.dot(w_ref[...], x_ref[0], preferred_element_type=jnp.float32)
    y_ref[0] = y.astype(y_ref.dtype)

    if hw % thw != 0:
        # Tail tile: Pallas masks the OOB *writes* of y automatically, but the
        # padded lanes read into the block are garbage, so they must be zeroed
        # before contributing to the batch statistics.
        t = pl.program_id(1)
        remaining = hw - t * thw                       # >= thw except last tile
        lane = jax.lax.broadcasted_iota(jnp.int32, y.shape, 1)
        y = jnp.where(lane < remaining, y, 0.0)

    s = jnp.sum(y, axis=-1, keepdims=True)             # (Cout, 1) sum
    sq = jnp.sum(y * y, axis=-1, keepdims=True)        # (Cout, 1) sum of squares
    col = jax.lax.broadcasted_iota(jnp.int32, stats_ref.shape[1:], 1)
    stats_ref[0] = jnp.where(col == 0, s, sq)          # single lane-dense block


def bn_apply_kernel(y_ref, scale_ref, shift_ref, o_ref):
    # y_ref: (1, Cout, thw) bf16;  scale_ref / shift_ref: (Cout, 1) f32
    o_ref[0] = y_ref[0].astype(jnp.float32) * scale_ref[...] + shift_ref[...]


def _pick_spatial_tile(hw, max_tile=8192):
    """Tile for the spatial (lane) axis: full extent if small, else a bounded
    multiple of 128 combined with a cdiv grid and tail masking."""
    if hw <= max_tile:
        return hw          # full-extent block is always a legal block shape
    return max_tile        # multiple of 128; tail tile handled by masking


def conv_bn_forward(x_nchw, weight, gamma, beta, *, eps=1e-3, max_tile=8192):
    """x_nchw: (N, Cin, H, W) f32; weight: (Cout, Cin, 1, 1) or (Cout, Cin)."""
    N, Cin, H, W = x_nchw.shape
    w2d = weight.reshape(weight.shape[0], Cin)
    Cout = w2d.shape[0]
    HW = H * W

    thw = _pick_spatial_tile(HW, max_tile)
    nT = pl.cdiv(HW, thw)
    x3d = x_nchw.reshape(N, Cin, HW)   # free reshape (NCHW is contiguous)

    mosaic = pltpu.CompilerParams(
        # Both axes independent -> megacore / multi-TC sharding on v7x.
        dimension_semantics=("parallel", "parallel"),
        vmem_limit_bytes=48 * 1024 * 1024,
    )

    # --- pass 1: 1x1 conv as W @ X tiles, fused partial BN statistics --------
    kernel1 = functools.partial(conv1x1_stats_kernel, hw=HW, thw=thw)
    y3d, stats = pl.pallas_call(
        kernel1,
        out_shape=(
            jax.ShapeDtypeStruct((N, Cout, HW), jnp.bfloat16),
            jax.ShapeDtypeStruct((N, Cout, nT * 128), jnp.float32),
        ),
        grid=(N, nT),
        in_specs=[
            pl.BlockSpec((1, Cin, thw), lambda n, t: (n, 0, t)),
            pl.BlockSpec((Cout, Cin), lambda n, t: (0, 0)),
        ],
        out_specs=(
            pl.BlockSpec((1, Cout, thw), lambda n, t: (n, 0, t)),
            pl.BlockSpec((1, Cout, 128), lambda n, t: (n, 0, t)),
        ),
        compiler_params=mosaic,
    )(x3d, w2d)

    # --- combine partial stats (tiny: N*nT*Cout values) in plain JAX ---------
    m_total = N * HW
    inv_m = 1.0 / float(m_total)                        # multiply, don't divide
    stats4 = stats.reshape(N, Cout, nT, 128)
    sum_c = stats4[..., 0].sum(axis=(0, 2))
    sumsq_c = stats4[..., 1].sum(axis=(0, 2))
    mean = sum_c * inv_m
    var = sumsq_c * inv_m - mean * mean                 # biased var (training BN)
    inv_std = jax.lax.rsqrt(var + eps)
    scale = (gamma * inv_std).reshape(Cout, 1).astype(jnp.float32)
    shift = (beta - mean * gamma * inv_std).reshape(Cout, 1).astype(jnp.float32)

    # --- pass 2: tiled, pipelined, parallel per-channel affine (normalize) ---
    out3d = pl.pallas_call(
        bn_apply_kernel,
        out_shape=jax.ShapeDtypeStruct((N, Cout, HW), jnp.float32),
        grid=(N, nT),
        in_specs=[
            pl.BlockSpec((1, Cout, thw), lambda n, t: (n, 0, t)),
            pl.BlockSpec((Cout, 1), lambda n, t: (0, 0)),
            pl.BlockSpec((Cout, 1), lambda n, t: (0, 0)),
        ],
        out_specs=pl.BlockSpec((1, Cout, thw), lambda n, t: (n, 0, t)),
        compiler_params=mosaic,
    )(y3d, scale, shift)

    return out3d.reshape(N, Cout, H, W)


def _reference(x_nchw, weight, gamma, beta, eps=1e-3):
    Cout = weight.shape[0]
    w2d = weight.reshape(Cout, x_nchw.shape[1])
    y = jnp.einsum("oc,nchw->nohw", w2d, x_nchw)
    mean = y.mean(axis=(0, 2, 3), keepdims=True)
    var = ((y - mean) ** 2).mean(axis=(0, 2, 3), keepdims=True)
    g = gamma.reshape(1, Cout, 1, 1)
    b = beta.reshape(1, Cout, 1, 1)
    return (y - mean) * jax.lax.rsqrt(var + eps) * g + b


def _run_case(key, N, H, W, *, max_tile, eps=1e-3, tag=""):
    Cin, Cout = 240, 40
    kx, kw, kg, kb = jax.random.split(key, 4)
    x = jax.random.normal(kx, (N, Cin, H, W), dtype=jnp.float32)
    # PyTorch Conv2d weight layout: (Cout, Cin, 1, 1)
    w = jax.random.normal(kw, (Cout, Cin, 1, 1), dtype=jnp.float32) * 0.05
    gamma = 1.0 + 0.1 * jax.random.normal(kg, (Cout,), dtype=jnp.float32)
    beta = 0.1 * jax.random.normal(kb, (Cout,), dtype=jnp.float32)

    out = conv_bn_forward(x, w, gamma, beta, eps=eps, max_tile=max_tile)
    out = jax.block_until_ready(out)

    ref = _reference(x, w, gamma, beta, eps=eps)
    assert out.shape == (N, Cout, H, W)
    # Tolerance accounts for the bf16 intermediate (stats & matmul stay f32).
    err = float(jnp.max(jnp.abs(out - ref)))
    assert jnp.allclose(out, ref, atol=2e-2, rtol=2e-2), (tag, err)


if __name__ == "__main__":
    # Module channel sizes are fixed (240 -> 40); shrink batch/spatial for demo.
    key = jax.random.PRNGKey(0)
    k1, k2 = jax.random.split(key)

    # Main case: single full-extent spatial tile per sample.
    _run_case(k1, N=2, H=16, W=16, max_tile=8192, tag="main")

    # Secondary case: forces the cdiv grid with a masked tail tile
    # (HW = 144 > max_tile = 128 -> thw = 128, nT = 2, tail of 16 lanes).
    _run_case(k2, N=2, H=12, W=12, max_tile=128, tag="tail-mask")

    print("KERNEL_OK")
</pallas_src>

<mosaic_0001>
module attributes {stable_mosaic.version = 11 : i64} {
  func.func @conv1x1_stats_kernel(%arg0: i32, %arg1: i32, %arg2: memref<1x240x256xf32, #tpu.memory_space<vmem>>, %arg3: memref<40x240xf32, #tpu.memory_space<vmem>>, %arg4: memref<1x40x256xbf16, #tpu.memory_space<vmem>>, %arg5: memref<1x40x128xf32, #tpu.memory_space<vmem>>) attributes {dimension_semantics = [#tpu.dimension_semantics<parallel>, #tpu.dimension_semantics<parallel>], iteration_bounds = array<i64: 2, 1>, scalar_prefetch = 0 : i64, scratch_operands = 0 : i64, tpu.core_type = #tpu.core_type<tc>, window_params = [{transform_indices = @transform_0, window_bounds = array<i64: 1, 240, 256>}, {pipeline_mode = #tpu.pipeline_mode<synchronous>, transform_indices = @transform_1, window_bounds = array<i64: 40, 240>}, {transform_indices = @transform_2, window_bounds = array<i64: 1, 40, 256>}, {transform_indices = @transform_3, window_bounds = array<i64: 1, 40, 128>}]} {
    %c0 = arith.constant 0 : index
    %c0_0 = arith.constant 0 : index
    %0 = vector.load %arg3[%c0, %c0_0] : memref<40x240xf32, #tpu.memory_space<vmem>>, vector<40x240xf32>
    %c0_1 = arith.constant 0 : index
    %c0_2 = arith.constant 0 : index
    %c0_3 = arith.constant 0 : index
    %1 = vector.load %arg2[%c0_1, %c0_2, %c0_3] : memref<1x240x256xf32, #tpu.memory_space<vmem>>, vector<1x240x256xf32>
    %2 = vector.shape_cast %1 : vector<1x240x256xf32> to vector<240x256xf32>
    %cst = arith.constant dense<0.000000e+00> : vector<40x256xf32>
    %3 = tpu.matmul %0, %2, %cst {dimension_numbers = #tpu.dot_dimension_numbers<[1], [0], [0], [1], [0, 0, 1, 1], [], []>} : vector<40x240xf32>, vector<240x256xf32>, vector<40x256xf32> -> vector<40x256xf32>
    %4 = arith.truncf %3 : vector<40x256xf32> to vector<40x256xbf16>
    %c0_4 = arith.constant 0 : index
    %c0_5 = arith.constant 0 : index
    %c0_6 = arith.constant 0 : index
    %5 = vector.load %arg4[%c0_4, %c0_5, %c0_6] : memref<1x40x256xbf16, #tpu.memory_space<vmem>>, vector<1x40x256xbf16>
    %6 = vector.shape_cast %5 : vector<1x40x256xbf16> to vector<40x256xbf16>
    %7 = vector.shape_cast %4 : vector<40x256xbf16> to vector<1x40x256xbf16>
    tpu.vector_store %arg4[%c0_4, %c0_5, %c0_6], %7 {strides = array<i32>} : memref<1x40x256xbf16, #tpu.memory_space<vmem>>, vector<1x40x256xbf16>,
    %cst_7 = arith.constant dense<0.000000e+00> : vector<40xf32>
    %8 = vector.multi_reduction <add>, %3, %cst_7 [1] : vector<40x256xf32> to vector<40xf32>
    %9 = vector.shape_cast %8 : vector<40xf32> to vector<40x1xf32>
    %10 = arith.mulf %3, %3 : vector<40x256xf32>
    %cst_8 = arith.constant dense<0.000000e+00> : vector<40xf32>
    %11 = vector.multi_reduction <add>, %10, %cst_8 [1] : vector<40x256xf32> to vector<40xf32>
    %12 = vector.shape_cast %11 : vector<40xf32> to vector<40x1xf32>
    %13 = tpu.iota {dimensions = array<i32: 1>} : vector<40x128xi32>
    %c0_i32 = arith.constant 0 : i32
    %14 = vector.broadcast %c0_i32 : i32 to vector<40x128xi32>
    %15 = arith.cmpi eq, %13, %14 : vector<40x128xi32>
    %16 = vector.shape_cast %9 : vector<40x1xf32> to vector<40x1xf32>
    %17 = vector.broadcast %16 : vector<40x1xf32> to vector<40x128xf32>
    %18 = vector.shape_cast %12 : vector<40x1xf32> to vector<40x1xf32>
    %19 = vector.broadcast %18 : vector<40x1xf32> to vector<40x128xf32>
    %20 = arith.select %15, %17, %19 : vector<40x128xi1>, vector<40x128xf32>
    %c0_9 = arith.constant 0 : index
    %c0_10 = arith.constant 0 : index
    %c0_11 = arith.constant 0 : index
    %21 = vector.load %arg5[%c0_9, %c0_10, %c0_11] : memref<1x40x128xf32, #tpu.memory_space<vmem>>, vector<1x40x128xf32>
    %22 = vector.shape_cast %21 : vector<1x40x128xf32> to vector<40x128xf32>
    %23 = vector.shape_cast %20 : vector<40x128xf32> to vector<1x40x128xf32>
    tpu.vector_store %arg5[%c0_9, %c0_10, %c0_11], %23 {strides = array<i32>} : memref<1x40x128xf32, #tpu.memory_space<vmem>>, vector<1x40x128xf32>,
    return
  }
  func.func @transform_0(%arg0: i32, %arg1: i32) -> (i32, i32, i32) {
    %c0_i32 = arith.constant 0 : i32
    %c0_i32_0 = arith.constant 0 : i32
    return %arg0, %c0_i32, %arg1 : i32, i32, i32
  }
  func.func @transform_1(%arg0: i32, %arg1: i32) -> (i32, i32) {
    %c0_i32 = arith.constant 0 : i32
    %c0_i32_0 = arith.constant 0 : i32
    %c0_i32_1 = arith.constant 0 : i32
    return %c0_i32, %c0_i32_0 : i32, i32
  }
  func.func @transform_2(%arg0: i32, %arg1: i32) -> (i32, i32, i32) {
    %c0_i32 = arith.constant 0 : i32
    %c0_i32_0 = arith.constant 0 : i32
    return %arg0, %c0_i32, %arg1 : i32, i32, i32
  }
  func.func @transform_3(%arg0: i32, %arg1: i32) -> (i32, i32, i32) {
    %c0_i32 = arith.constant 0 : i32
    %c0_i32_0 = arith.constant 0 : i32
    return %arg0, %c0_i32, %arg1 : i32, i32, i32
  }
}

</mosaic_0001>

<llo_original>
// kernel: tpu_custom_call.1
$region0: #{tpu_custom_call.1}
  #allocation0 [shape = 'u32[]', space=smem, size = 0x4, offset = 0x4, fixed_abs, tag = 'smem constant byte address 0x4 - core index']
  #allocation1 [shape = 'u32[144,128]{1,0:T(1,128)}', space=vmem, size = 0x12000, scoped, tag = 'internal scratch']
  %s0 = inlined_call_operand.hbm [shape: f32[2,240,256], index: 0, kind: input, shape index: {}]
  %s1 = inlined_call_operand.hbm [shape: f32[40,240], index: 1, kind: input, shape index: {}]
  %s2 = inlined_call_operand.hbm [shape: bf16[2,40,256], index: 2, kind: output, shape index: {0}]
  %s3 = inlined_call_operand.hbm [shape: f32[2,40,128], index: 3, kind: output, shape index: {1}]
  %4 = xla_tuple %s2, %s3
  %s5 = sld [smem:[#allocation0]]
  $region57: #{tpu_custom_call.1} parent=0
    _
  %s7 = ssub.s32 1, %s5
  %s8 = scalar_select 0, %s7, %s5
  $region1: #{tpu_custom_call.1} parent=0
    #allocation2 [shape = 'u8[491520]{0}', space=vmem, size = 0x78000, scoped, tag = 'input window, operand 0']
    #allocation3 [shape = 's32[2]{0}', space=sflag, size = 0x8, scoped, tag = 'scoped memory for tpu_custom_call.1']
    #allocation4 [shape = 's32[2]{0}', space=sflag, size = 0x8, scoped, tag = 'scoped memory for tpu_custom_call.1']
    #allocation5 [shape = 'u8[40960]{0}', space=vmem, size = 0xa000, scoped, tag = 'input window, operand 1, single buffered']
    #allocation6 [shape = 's32[1]{0}', space=sflag, size = 0x4, scoped, tag = 'scoped memory for tpu_custom_call.1']
    #allocation7 [shape = 'u8[40960]{0}', space=vmem, size = 0xa000, scoped, tag = 'output window, operand 0']
    #allocation8 [shape = 'u8[40960]{0}', space=vmem, size = 0xa000, scoped, tag = 'output window, operand 1']
    #allocation9 [shape = 's32[2]{0}', space=sflag, size = 0x8, scoped, tag = 'scoped memory for tpu_custom_call.1']
    %9 = vsyncpa [#allocation3], 0
    %s10 = scalar_lea.sflag [#allocation3], 1
    %11 = vsyncpa %s10, 0
    %12 = vsyncpa [#allocation6], 0
    %13 = vsyncpa [#allocation4], 0
    %s14 = scalar_lea.sflag [#allocation4], 1
    %15 = vsyncpa %s14, 0
    %16 = vsyncpa [#allocation9], 0
    %s17 = scalar_lea.sflag [#allocation9], 1
    %18 = vsyncpa %s17, 0
    loop: start=0, step=1, limit=4
    $region2: #{tpu_custom_call.1} parent=1 // loop_pre_header
      _
    $region3: #{tpu_custom_call.1} parent=1 // loop_header
      %s20 = sphi 0, %s24
      %p21 = scmp.ge.s32.totalorder %s20, 4
      %s27 = sphi 0, %s39
      %s28 = sphi 0, %s35
      %s29 = sphi 0, %s27
      %s30 = sphi 0, %s28
      %s31 = sphi 0, %s29
      %s32 = sphi 0, %s30
      %s44 = sphi 0, %s46
      %s47 = sphi 0, %s44
      %s48 = sphi 0, %s47
      %s64 = sphi 0, %s48
      %s68 = sphi 0, %s68
      %s70 = sphi 0, %s68
      %s71 = sphi 0, %s70
      %s85 = sphi 0, %s71
      %s93 = sphi 0, %s95
      %s96 = sphi 0, %s93
      %s97 = sphi 0, %s96
      %s113 = sphi 0, %s97
      %s121 = sphi 0, %s123
      %s124 = sphi 0, %s121
      %s125 = sphi 0, %s124
      %s141 = sphi 0, %s125
    $region4: #{tpu_custom_call.1} parent=1 // loop_header_branch
      %23 = sbr.rel (%p21) target = $region8
    $region5: #{tpu_custom_call.1} parent=1 // loop_body
      %s25 = ssub.s32 %s20, 1
      %s26 = ssub.s32 %s20, 2
      %s33 = sadd.s32 1, %s28
      %p34 = scmp.ge.s32.totalorder %s33, 1
      %s35 = scalar_select %p34, 0, %s33
      %s36 = sadd.s32 1, %s27
      %s37 = scalar_select %p34, %s36, %s27
      %p38 = scmp.ge.s32.totalorder %s37, 2
      %s39 = scalar_select %p38, 0, %s37
      %s40 = ssub.s32 %s27, %s39
      %s41 = ssub.s32 %s28, %s35
      %s42 = sor.u32 %s40, %s41
      %p43 = scmp.eq.s32.totalorder %s42, 0
      %s45 = sadd.s32 %s44, 1
      %s46 = scalar_select %p43, %s44, %s45
      %p49 = pneg %p43
      %p50 = scmp.eq.s32.totalorder %s20, 1
      %p51 = por %p49, %p50
      %p52 = scmp.ne.s32.totalorder %s44, %s47
      %p53 = scmp.eq.s32.totalorder %s20, 0
      %p54 = por %p52, %p53
      %p55 = scmp.ne.s32.totalorder %s44, %s47
      %p56 = scmp.eq.s32.totalorder %s25, 1
      %p57 = por %p55, %p56
      %p58 = scmp.ne.s32.totalorder %s47, %s48
      %p59 = scmp.eq.s32.totalorder %s25, 0
      %p60 = por %p58, %p59
      %p61 = scmp.ne.s32.totalorder %s47, %s48
      %p62 = scmp.eq.s32.totalorder %s26, 1
      %p63 = por %p61, %p62
      %p65 = scmp.ne.s32.totalorder %s48, %s64
      %p66 = scmp.eq.s32.totalorder %s26, 0
      %p67 = por %p65, %p66
      %s69 = sadd.s32 %s68, 1
      %p72 = scmp.eq.s32.totalorder %s20, 1
      %p73 = scmp.ne.s32.totalorder %s68, %s70
      %p74 = scmp.eq.s32.totalorder %s20, 0
      %p75 = por %p73, %p74
      %p76 = scmp.ne.s32.totalorder %s68, %s70
      %p77 = scmp.eq.s32.totalorder %s25, 1
      %p78 = por %p76, %p77
      %p79 = scmp.ne.s32.totalorder %s70, %s71
      %p80 = scmp.eq.s32.totalorder %s25, 0
      %p81 = por %p79, %p80
      %p82 = scmp.ne.s32.totalorder %s70, %s71
      %p83 = scmp.eq.s32.totalorder %s26, 1
      %p84 = por %p82, %p83
      %p86 = scmp.ne.s32.totalorder %s71, %s85
      %p87 = scmp.eq.s32.totalorder %s26, 0
      %p88 = por %p86, %p87
      %s89 = ssub.s32 %s27, %s39
      %s90 = ssub.s32 %s28, %s35
      %s91 = sor.u32 %s89, %s90
      %p92 = scmp.eq.s32.totalorder %s91, 0
      %s94 = sadd.s32 %s93, 1
      %s95 = scalar_select %p92, %s93, %s94
      %p98 = pneg %p92
      %p99 = scmp.eq.s32.totalorder %s20, 1
      %p100 = por %p98, %p99
      %p101 = scmp.ne.s32.totalorder %s93, %s96
      %p102 = scmp.eq.s32.totalorder %s20, 0
      %p103 = por %p101, %p102
      %p104 = scmp.ne.s32.totalorder %s93, %s96
      %p105 = scmp.eq.s32.totalorder %s25, 1
      %p106 = por %p104, %p105
      %p107 = scmp.ne.s32.totalorder %s96, %s97
      %p108 = scmp.eq.s32.totalorder %s25, 0
      %p109 = por %p107, %p108
      %p110 = scmp.ne.s32.totalorder %s96, %s97
      %p111 = scmp.eq.s32.totalorder %s26, 1
      %p112 = por %p110, %p111
      %p114 = scmp.ne.s32.totalorder %s97, %s113
      %p115 = scmp.eq.s32.totalorder %s26, 0
      %p116 = por %p114, %p115
      %s117 = ssub.s32 %s27, %s39
      %s118 = ssub.s32 %s28, %s35
      %s119 = sor.u32 %s117, %s118
      %p120 = scmp.eq.s32.totalorder %s119, 0
      %s122 = sadd.s32 %s121, 1
      %s123 = scalar_select %p120, %s121, %s122
      %p126 = pneg %p120
      %p127 = scmp.eq.s32.totalorder %s20, 1
      %p128 = por %p126, %p127
      %p129 = scmp.ne.s32.totalorder %s121, %s124
      %p130 = scmp.eq.s32.totalorder %s20, 0
      %p131 = por %p129, %p130
      %p132 = scmp.ne.s32.totalorder %s121, %s124
      %p133 = scmp.eq.s32.totalorder %s25, 1
      %p134 = por %p132, %p133
      %p135 = scmp.ne.s32.totalorder %s124, %s125
      %p136 = scmp.eq.s32.totalorder %s25, 0
      %p137 = por %p135, %p136
      %p138 = scmp.ne.s32.totalorder %s124, %s125
      %p139 = scmp.eq.s32.totalorder %s26, 1
      %p140 = por %p138, %p139
      %p142 = scmp.ne.s32.totalorder %s125, %s141
      %p143 = scmp.eq.s32.totalorder %s26, 0
      %p144 = por %p142, %p143
      %p145 = scmp.le.s32.totalorder 1, %s20
      %p146 = scmp.lt.s32.totalorder %s20, 3
      %p147 = pnand %p145, %p146
      %p148 = pneg %p147
      // Predicated region
      $region9: #{tpu_custom_call.1} parent=5 // pred_check
        _
      $region10: #{tpu_custom_call.1} parent=5 // pred_check_branch
        %150 = sbr.rel (%p147) target = $region12
      $region11: #{tpu_custom_call.1} parent=5 // pred_region
        %s151 = ssub.s32 %s20, 1
        // Predicated region
        $region13: #{tpu_custom_call.1} parent=11 // pred_check
          %p152 = pneg %p81
        $region14: #{tpu_custom_call.1} parent=11 // pred_check_branch
          %154 = sbr.rel (%p152) target = $region16
        $region15: #{tpu_custom_call.1} parent=11 // pred_region
          %s156 = ssub.s32 1280, 1280
          %157 = vsyncadd [#allocation6], %s156
          %s158 = sshll.u32 [#allocation5], 4
          %s159 = int_to_ptr.vmem [resolvable:$true] %s158
          %164 = dma.hbm_to_vmem [thread:$0]  %s1, 1280, %s159, [#allocation6], 256, 256, 16
        $region16: #{tpu_custom_call.1} parent=11 // pred_fallthru
          _
      $region12: #{tpu_custom_call.1} parent=5 // pred_fallthru
        _
      %p165 = scmp.lt.s32.totalorder %s20, 2
      // Predicated region
      $region17: #{tpu_custom_call.1} parent=5 // pred_check
        %p166 = pneg %p165
      $region18: #{tpu_custom_call.1} parent=5 // pred_check_branch
        %168 = sbr.rel (%p166) target = $region20
      $region19: #{tpu_custom_call.1} parent=5 // pred_region
        // Predicated region
        $region21: #{tpu_custom_call.1} parent=19 // pred_check
          %p169 = pneg %p54
        $region22: #{tpu_custom_call.1} parent=19 // pred_check_branch
          %171 = sbr.rel (%p169) target = $region24
        $region23: #{tpu_custom_call.1} parent=19 // pred_region
          %s172 = sand.u32 %s44, 1
          %s173 = scalar_lea.sflag [#allocation3], %s172
          %s174 = sand.u32 %s44, 1
          %s175 = smul.addr %s174, 480
          %s176 = scalar_lea.vmem [#allocation2], %s175
          %s177 = smul.u32 2, %s28
          %s179 = ssub.s32 7680, 7680
          %180 = vsyncadd %s173, %s179
          %s181 = smul.addr %s27, 60
          %s182 = sadd.s32 %s177, %s181
          %s183 = smul.addr %s182, 128
          %s184 = scalar_lea.hbm %s0, %s183
          %s185 = sshll.u32 %s176, 4
          %s186 = int_to_ptr.vmem [resolvable:$true] %s185
          %191 = dma.hbm_to_vmem [thread:$0]  %s184, 7680, %s186, %s173, 256, 256, 16
        $region24: #{tpu_custom_call.1} parent=19 // pred_fallthru
          _
      $region20: #{tpu_custom_call.1} parent=5 // pred_fallthru
        _
      %p192 = scmp.le.s32.totalorder 1, %s20
      %p193 = scmp.lt.s32.totalorder %s20, 3
      %p194 = pnand %p192, %p193
      %p195 = pneg %p194
      // Predicated region
      $region25: #{tpu_custom_call.1} parent=5 // pred_check
        _
      $region26: #{tpu_custom_call.1} parent=5 // pred_check_branch
        %197 = sbr.rel (%p194) target = $region28
      $region27: #{tpu_custom_call.1} parent=5 // pred_region
        %s198 = ssub.s32 %s20, 1
        %s199 = sand.u32 %s47, 1
        %s200 = scalar_lea.sflag [#allocation3], %s199
        %s201 = sand.u32 %s47, 1
        %s202 = smul.addr %s201, 480
        %s203 = scalar_lea.vmem [#allocation2], %s202
        // Predicated region
        $region29: #{tpu_custom_call.1} parent=27 // pred_check
          %p204 = pneg %p60
        $region30: #{tpu_custom_call.1} parent=27 // pred_check_branch
          %206 = sbr.rel (%p204) target = $region32
        $region31: #{tpu_custom_call.1} parent=27 // pred_region
          %207 = dma.done %s200, 7680
        $region32: #{tpu_custom_call.1} parent=27 // pred_fallthru
          _
        // Predicated region
        $region33: #{tpu_custom_call.1} parent=27 // pred_check
          %p208 = pneg %p81
        $region34: #{tpu_custom_call.1} parent=27 // pred_check_branch
          %210 = sbr.rel (%p208) target = $region36
        $region35: #{tpu_custom_call.1} parent=27 // pred_region
          %211 = dma.done [#allocation6], 1280
        $region36: #{tpu_custom_call.1} parent=27 // pred_fallthru
          _
        %s212 = sand.u32 %s47, 1
        %s213 = scalar_lea.sflag [#allocation3], %s212
        %s214 = sand.u32 %s47, 1
        %s215 = smul.addr %s214, 480
        %s216 = scalar_lea.vmem [#allocation2], %s215
        %p217 = pneg %p60
        %p218 = pneg %p57
        %p219 = pneg %p81
        %p220 = pneg %p78
        %p221 = pneg %p109
        %p222 = pneg %p106
        %s223 = sand.u32 %s96, 1
        %s224 = scalar_lea.sflag [#allocation4], %s223
        %s225 = sand.u32 %s96, 1
        %s226 = smul.addr %s225, 40
        %s227 = scalar_lea.vmem [#allocation7], %s226
        %p228 = pneg %p137
        %p229 = pneg %p134
        %s230 = sand.u32 %s124, 1
        %s231 = scalar_lea.sflag [#allocation9], %s230
        %s232 = sand.u32 %s124, 1
        %s233 = smul.addr %s232, 40
        %s234 = scalar_lea.vmem [#allocation8], %s233
        %s235 = smul.u32 2, %s30
        %s236 = smul.u32 2, %s30
        %v237 = vld [vmem:[#allocation5] sm:$0xff]
        %v238 = vld [vmem:[#allocation5 + $0x8] sm:$0xff]
        %v239 = vld [vmem:[#allocation5 + $0x10] sm:$0xff]
        %v240 = vld [vmem:[#allocation5 + $0x18] sm:$0xff]
        %v241 = vld [vmem:[#allocation5 + $0x20] sm:$0xff]
        %v242 = vld [vmem:[#allocation5 + $0x28] sm:$0xff]
        %v243 = vld [vmem:[#allocation5 + $0x30] sm:$0xff]
        %v244 = vld [vmem:[#allocation5 + $0x38] sm:$0xff]
        %v245 = vld [vmem:[#allocation5 + $0x40] sm:$0xff]
        %v246 = vld [vmem:[#allocation5 + $0x48] sm:$0xff]
        %v247 = vld [vmem:[%s203] sm:$0xff]
        %v248 = vld [vmem:[%s203 + $0x8] sm:$0xff]
        %v249 = vld [vmem:[%s203 + $0x10] sm:$0xff]
        %v250 = vld [vmem:[%s203 + $0x18] sm:$0xff]
        %v251 = vld [vmem:[%s203 + $0x20] sm:$0xff]
        %v252 = vld [vmem:[%s203 + $0x28] sm:$0xff]
        %v253 = vld [vmem:[%s203 + $0x30] sm:$0xff]
        %v254 = vld [vmem:[%s203 + $0x38] sm:$0xff]
        %v255 = vld [vmem:[%s203 + $0x40] sm:$0xff]
        %v256 = vld [vmem:[%s203 + $0x48] sm:$0xff]
        %v257 = vld [vmem:[%s203 + $0x50] sm:$0xff]
        %v258 = vld [vmem:[%s203 + $0x58] sm:$0xff]
        %v259 = vld [vmem:[%s203 + $0x60] sm:$0xff]
        %v260 = vld [vmem:[%s203 + $0x68] sm:$0xff]
        %v261 = vld [vmem:[%s203 + $0x70] sm:$0xff]
        %v262 = vld [vmem:[%s203 + $0x78] sm:$0xff]
        %v263 = vld [vmem:[%s203 + $0x80] sm:$0xff]
        %v264 = vld [vmem:[%s203 + $0x88] sm:$0xff]
        %v265 = vld [vmem:[%s203 + $0x90] sm:$0xff]
        %v266 = vld [vmem:[%s203 + $0x98] sm:$0xff]
        %v267 = vld [vmem:[%s203 + $0xa0] sm:$0xff]
        %v268 = vld [vmem:[%s203 + $0xa8] sm:$0xff]
        %v269 = vld [vmem:[%s203 + $0xb0] sm:$0xff]
        %v270 = vld [vmem:[%s203 + $0xb8] sm:$0xff]
        %v271 = vld [vmem:[%s203 + $0xc0] sm:$0xff]
        %v272 = vld [vmem:[%s203 + $0xc8] sm:$0xff]
        %v273 = vld [vmem:[%s203 + $0xd0] sm:$0xff]
        %v274 = vld [vmem:[%s203 + $0xd8] sm:$0xff]
        %v275 = vld [vmem:[%s203 + $0xe0] sm:$0xff]
        %v276 = vld [vmem:[%s203 + $0xe8] sm:$0xff]
        %v277 = vld [vmem:[%s203 + $0xf0] sm:$0xff]
        %v278 = vld [vmem:[%s203 + $0xf8] sm:$0xff]
        %v279 = vld [vmem:[%s203 + $0x100] sm:$0xff]
        %v280 = vld [vmem:[%s203 + $0x108] sm:$0xff]
        %v281 = vld [vmem:[%s203 + $0x110] sm:$0xff]
        %v282 = vld [vmem:[%s203 + $0x118] sm:$0xff]
        %v283 = vld [vmem:[%s203 + $0x120] sm:$0xff]
        %v284 = vld [vmem:[%s203 + $0x128] sm:$0xff]
        %v285 = vld [vmem:[%s203 + $0x130] sm:$0xff]
        %v286 = vld [vmem:[%s203 + $0x138] sm:$0xff]
        %v287 = vld [vmem:[%s203 + $0x140] sm:$0xff]
        %v288 = vld [vmem:[%s203 + $0x148] sm:$0xff]
        %v289 = vld [vmem:[%s203 + $0x150] sm:$0xff]
        %v290 = vld [vmem:[%s203 + $0x158] sm:$0xff]
        %v291 = vld [vmem:[%s203 + $0x160] sm:$0xff]
        %v292 = vld [vmem:[%s203 + $0x168] sm:$0xff]
        %v293 = vld [vmem:[%s203 + $0x170] sm:$0xff]
        %v294 = vld [vmem:[%s203 + $0x178] sm:$0xff]
        %v295 = vld [vmem:[%s203 + $0x180] sm:$0xff]
        %v296 = vld [vmem:[%s203 + $0x188] sm:$0xff]
        %v297 = vld [vmem:[%s203 + $0x190] sm:$0xff]
        %v298 = vld [vmem:[%s203 + $0x198] sm:$0xff]
        %v299 = vld [vmem:[%s203 + $0x1a0] sm:$0xff]
        %v300 = vld [vmem:[%s203 + $0x1a8] sm:$0xff]
        %v301 = vld [vmem:[%s203 + $0x1b0] sm:$0xff]
        %v302 = vld [vmem:[%s203 + $0x1b8] sm:$0xff]
        %v303 = vld [vmem:[%s203 + $0x1c0] sm:$0xff]
        %v304 = vld [vmem:[%s203 + $0x1c8] sm:$0xff]
        %v305 = vld [vmem:[%s203 + $0x1d0] sm:$0xff]
        %v306 = vld [vmem:[%s203 + $0x1d8] sm:$0xff]
        %vm307 = vcmask 916480
        %v309 = vsel %vm307, %v238, 0
        %v312 = vsel %vm307, %v240, 0
        %v315 = vsel %vm307, %v242, 0
        %v318 = vsel %vm307, %v244, 0
        %v321 = vsel %vm307, %v246, 0
        %323 = vmatprep.subr.mxu0 %v248
        %324 = vmatpush1.msra.mxu0 %v247
        %325 = vmatprep.subr.mxu0 %v250
        %326 = vmatpush1.msra.mxu0 %v249
        %327 = vmatprep.subr.mxu0 %v252
        %328 = vmatpush1.msra.mxu0 %v251
        %329 = vmatprep.subr.mxu0 %v254
        %330 = vmatpush1.msra.mxu0 %v253
        %331 = vmatprep.subr.mxu0 %v256
        %332 = vmatpush1.msra.mxu0 %v255
        %333 = vmatprep.subr.mxu0 %v258
        %334 = vmatpush1.msra.mxu0 %v257
        %335 = vmatprep.subr.mxu0 %v260
        %336 = vmatpush1.msra.mxu0 %v259
        %337 = vmatprep.subr.mxu0 %v262
        %338 = vmatpush1.msra.mxu0 %v261
        %339 = vmatprep.subr.mxu0 %v264
        %340 = vmatpush1.msra.mxu0 %v263
        %341 = vmatprep.subr.mxu0 %v266
        %342 = vmatpush1.msra.mxu0 %v265
        %343 = vmatprep.subr.mxu0 %v268
        %344 = vmatpush1.msra.mxu0 %v267
        %345 = vmatprep.subr.mxu0 %v270
        %346 = vmatpush1.msra.mxu0 %v269
        %347 = vmatprep.subr.mxu0 %v272
        %348 = vmatpush1.msra.mxu0 %v271
        %349 = vmatprep.subr.mxu0 %v274
        %350 = vmatpush1.msra.mxu0 %v273
        %351 = vmatprep.subr.mxu0 %v276
        %352 = vmatpush1.msra.mxu0 %v275
        %353 = vmatprep.subr.mxu0 %v278
        %354 = vmatpush1.msra.mxu0 %v277
        %355 = vmatprep.subr.mxu0 %v280
        %356 = vmatpush1.msra.mxu0 %v279
        %357 = vmatprep.subr.mxu0 %v282
        %358 = vmatpush1.msra.mxu0 %v281
        %359 = vmatprep.subr.mxu0 %v284
        %360 = vmatpush1.msra.mxu0 %v283
        %361 = vmatprep.subr.mxu0 %v286
        %362 = vmatpush1.msra.mxu0 %v285
        %363 = vmatprep.subr.mxu0 %v288
        %364 = vmatpush1.msra.mxu0 %v287
        %365 = vmatprep.subr.mxu0 %v290
        %366 = vmatpush1.msra.mxu0 %v289
        %367 = vmatprep.subr.mxu0 %v292
        %368 = vmatpush1.msra.mxu0 %v291
        %369 = vmatprep.subr.mxu0 %v294
        %370 = vmatpush1.msra.mxu0 %v293
        %371 = vmatprep.subr.mxu0 %v296
        %372 = vmatpush1.msra.mxu0 %v295
        %373 = vmatprep.subr.mxu0 %v298
        %374 = vmatpush1.msra.mxu0 %v297
        %375 = vmatprep.subr.mxu0 %v300
        %376 = vmatpush1.msra.mxu0 %v299
        %377 = vmatprep.subr.mxu0 %v302
        %378 = vmatpush1.msra.mxu0 %v301
        %379 = vmatprep.subr.mxu0 %v304
        %380 = vmatpush1.msra.mxu0 %v303
        %381 = vmatprep.subr.mxu0 %v306
        %382 = vmatpush1.msra.mxu0 %v305
        %383 = vmatprep.subr.mxu0 0.0
        %384 = vmatpush1.msra.mxu0 0.0
        %385 = vmatprep.subr.mxu0 0.0
        %386 = vmatpush1.msra.mxu0 0.0
        %387 = vmatprep.mubr.f32.mxu0 %v309
        %388 = vmatmul.mubr.f32.gmra.mrb[0].mxu0 %v237
        %v389 = vpop.f32.mrb[0].mxu0
        %v390 = vadd.f32 0.0, %v389
        %v391 = vpop.f32.mrb[0].mxu0
        %v392 = vadd.f32 0.0, %v391
        %393 = vmatprep.mubr.f32.mxu0 %v312
        %394 = vmatmul.mubr.f32.gmra.mrb[0].mxu0 %v239
        %v395 = vpop.f32.mrb[0].mxu0
        %v396 = vadd.f32 0.0, %v395
        %v397 = vpop.f32.mrb[0].mxu0
        %v398 = vadd.f32 0.0, %v397
        %399 = vmatprep.mubr.f32.mxu0 %v315
        %400 = vmatmul.mubr.f32.gmra.mrb[0].mxu0 %v241
        %v401 = vpop.f32.mrb[0].mxu0
        %v402 = vadd.f32 0.0, %v401
        %v403 = vpop.f32.mrb[0].mxu0
        %v404 = vadd.f32 0.0, %v403
        %405 = vmatprep.mubr.f32.mxu0 %v318
        %406 = vmatmul.mubr.f32.gmra.mrb[0].mxu0 %v243
        %v407 = vpop.f32.mrb[0].mxu0
        %v408 = vadd.f32 0.0, %v407
        %v409 = vpop.f32.mrb[0].mxu0
        %v410 = vadd.f32 0.0, %v409
        %411 = vmatprep.mubr.f32.mxu0 %v321
        %412 = vmatmul.mubr.f32.gmra.mrb[0].mxu0 %v245
        %v413 = vpop.f32.mrb[0].mxu0
        %v414 = vadd.f32 0.0, %v413
        %v415 = vpop.f32.mrb[0].mxu0
        %v416 = vadd.f32 0.0, %v415
        %417 = vdwg.mxu0
        %v418 = vpack.c.bf16 %v396, %v390
        %v419 = vpack.c.bf16 %v398, %v392
        %v420 = vpack.c.bf16 %v408, %v402
        %v421 = vpack.c.bf16 %v410, %v404
        %v422 = vpack.c.bf16 %v414, %v414
        %v423 = vpack.c.bf16 %v416, %v416
        %v430 = vunpack.c.l.b16 %v418
        %v431 = vunpack.c.l.b16 %v419
        %v432 = vunpack.c.h.b16 %v418
        %v433 = vunpack.c.h.b16 %v419
        %v434 = vunpack.c.l.b16 %v420
        %v435 = vunpack.c.l.b16 %v421
        %v436 = vunpack.c.h.b16 %v420
        %v437 = vunpack.c.h.b16 %v421
        %v438 = vunpack.c.l.b16 %v422
        %v439 = vunpack.c.l.b16 %v423
        %v440 = vpack.c.b16 %v431, %v430
        %v441 = vpack.c.b16 %v433, %v432
        %v442 = vpack.c.b16 %v435, %v434
        %v443 = vpack.c.b16 %v437, %v436
        %v444 = vpack.c.b16 %v439, %v438
        %450 = vst [vmem:[%s227] sm:$0xff] %v440
        %451 = vst [vmem:[%s227 + $0x8] sm:$0xff] %v441
        %452 = vst [vmem:[%s227 + $0x10] sm:$0xff] %v442
        %453 = vst [vmem:[%s227 + $0x18] sm:$0xff] %v443
        %454 = vst [vmem:[%s227 + $0x20] sm:$0xff] %v444
        %v455 = vadd.f32 %v390, %v392
        %456 = vadd.xlane.f32.xlu0 %v455
        %v457 = vpop.xlane.xlu0 %456
        %v458 = vadd.f32 %v396, %v398
        %459 = vadd.xlane.f32.xlu0 %v458
        %v460 = vpop.xlane.xlu0 %459
        %v461 = vadd.f32 %v402, %v404
        %462 = vadd.xlane.f32.xlu0 %v461
        %v463 = vpop.xlane.xlu0 %462
        %v464 = vadd.f32 %v408, %v410
        %465 = vadd.xlane.f32.xlu0 %v464
        %v466 = vpop.xlane.xlu0 %465
        %v467 = vadd.f32 %v414, %v416
        %468 = vadd.xlane.f32.xlu0 %v467
        %v469 = vpop.xlane.xlu0 %468
        %v470 = vmul.f32 %v390, %v390
        %v471 = vmul.f32 %v392, %v392
        %v472 = vmul.f32 %v396, %v396
        %v473 = vmul.f32 %v398, %v398
        %v474 = vmul.f32 %v402, %v402
        %v475 = vmul.f32 %v404, %v404
        %v476 = vmul.f32 %v408, %v408
        %v477 = vmul.f32 %v410, %v410
        %v478 = vmul.f32 %v414, %v414
        %v479 = vmul.f32 %v416, %v416
        %v480 = vadd.f32 %v470, %v471
        %481 = vadd.xlane.f32.xlu0 %v480
        %v482 = vpop.xlane.xlu0 %481
        %v483 = vadd.f32 %v472, %v473
        %484 = vadd.xlane.f32.xlu0 %v483
        %v485 = vpop.xlane.xlu0 %484
        %v486 = vadd.f32 %v474, %v475
        %487 = vadd.xlane.f32.xlu0 %v486
        %v488 = vpop.xlane.xlu0 %487
        %v489 = vadd.f32 %v476, %v477
        %490 = vadd.xlane.f32.xlu0 %v489
        %v491 = vpop.xlane.xlu0 %490
        %v492 = vadd.f32 %v478, %v479
        %493 = vadd.xlane.f32.xlu0 %v492
        %v494 = vpop.xlane.xlu0 %493
        %v495 = vlaneseq
        %v496 = vand.u32 %v495, 127
        %vm497 = vcmp.eq.s32.totalorder %v496, 0
        %v498 = vsel %vm497, %v457, %v482
        %v499 = vsel %vm497, %v460, %v485
        %v500 = vsel %vm497, %v463, %v488
        %v501 = vsel %vm497, %v466, %v491
        %v502 = vsel %vm497, %v469, %v494
        %503 = vst [vmem:[%s234] sm:$0xff] %v498
        %504 = vst [vmem:[%s234 + $0x8] sm:$0xff] %v499
        %505 = vst [vmem:[%s234 + $0x10] sm:$0xff] %v500
        %506 = vst [vmem:[%s234 + $0x18] sm:$0xff] %v501
        %507 = vst [vmem:[%s234 + $0x20] sm:$0xff] %v502
        %s508 = sand.u32 %s96, 1
        %s509 = scalar_lea.sflag [#allocation4], %s508
        %s510 = sand.u32 %s96, 1
        %s511 = smul.addr %s510, 40
        %s512 = scalar_lea.vmem [#allocation7], %s511
        %s513 = sand.u32 %s124, 1
        %s514 = scalar_lea.sflag [#allocation9], %s513
        %s515 = sand.u32 %s124, 1
        %s516 = smul.addr %s515, 40
        %s517 = scalar_lea.vmem [#allocation8], %s516
        // Predicated region
        $region37: #{tpu_custom_call.1} parent=27 // pred_check
          %p518 = pneg %p106
        $region38: #{tpu_custom_call.1} parent=27 // pred_check_branch
          %520 = sbr.rel (%p518) target = $region40
        $region39: #{tpu_custom_call.1} parent=27 // pred_region
          %s521 = smul.u32 2, %s30
          %s523 = ssub.s32 640, 640
          %524 = vsyncadd %s509, %s523
          %s525 = smul.addr %s29, 10
          %s526 = sadd.s32 %s521, %s525
          %s527 = smul.addr %s526, 64
          %s528 = scalar_lea.hbm %s2, %s527
          %s529 = sshll.u32 %s512, 4
          %s530 = int_to_ptr.vmem [resolvable:$true] %s529
          %535 = dma.vmem_to_hbm [thread:$0]  %s530, 640, %s528, %s509, 128, 128, 8
        $region40: #{tpu_custom_call.1} parent=27 // pred_fallthru
          _
        // Predicated region
        $region41: #{tpu_custom_call.1} parent=27 // pred_check
          %p536 = pneg %p134
        $region42: #{tpu_custom_call.1} parent=27 // pred_check_branch
          %538 = sbr.rel (%p536) target = $region44
        $region43: #{tpu_custom_call.1} parent=27 // pred_region
          %s540 = ssub.s32 640, 640
          %541 = vsyncadd %s514, %s540
          %s542 = smul.addr %s29, 5
          %s543 = sadd.s32 %s30, %s542
          %s544 = smul.addr %s543, 128
          %s545 = scalar_lea.hbm %s3, %s544
          %s546 = sshll.u32 %s517, 4
          %s547 = int_to_ptr.vmem [resolvable:$true] %s546
          %552 = dma.vmem_to_hbm [thread:$0]  %s547, 640, %s545, %s514, 128, 128, 8
        $region44: #{tpu_custom_call.1} parent=27 // pred_fallthru
          _
      $region28: #{tpu_custom_call.1} parent=5 // pred_fallthru
        _
      %p553 = scmp.le.s32.totalorder 2, %s20
      // Predicated region
      $region45: #{tpu_custom_call.1} parent=5 // pred_check
        %p554 = pneg %p553
      $region46: #{tpu_custom_call.1} parent=5 // pred_check_branch
        %556 = sbr.rel (%p554) target = $region48
      $region47: #{tpu_custom_call.1} parent=5 // pred_region
        %s557 = ssub.s32 %s20, 2
        // Predicated region
        $region49: #{tpu_custom_call.1} parent=47 // pred_check
          %p558 = pneg %p112
        $region50: #{tpu_custom_call.1} parent=47 // pred_check_branch
          %560 = sbr.rel (%p558) target = $region52
        $region51: #{tpu_custom_call.1} parent=47 // pred_region
          %s561 = sand.u32 %s97, 1
          %s562 = scalar_lea.sflag [#allocation4], %s561
          %s563 = sand.u32 %s97, 1
          %s564 = smul.addr %s563, 40
          %s565 = scalar_lea.vmem [#allocation7], %s564
          %566 = dma.done %s562, 640
        $region52: #{tpu_custom_call.1} parent=47 // pred_fallthru
          _
        // Predicated region
        $region53: #{tpu_custom_call.1} parent=47 // pred_check
          %p567 = pneg %p140
        $region54: #{tpu_custom_call.1} parent=47 // pred_check_branch
          %569 = sbr.rel (%p567) target = $region56
        $region55: #{tpu_custom_call.1} parent=47 // pred_region
          %s570 = sand.u32 %s125, 1
          %s571 = scalar_lea.sflag [#allocation9], %s570
          %s572 = sand.u32 %s125, 1
          %s573 = smul.addr %s572, 40
          %s574 = scalar_lea.vmem [#allocation8], %s573
          %575 = dma.done %s571, 640
        $region56: #{tpu_custom_call.1} parent=47 // pred_fallthru
          _
      $region48: #{tpu_custom_call.1} parent=5 // pred_fallthru
        _
    $region6: #{tpu_custom_call.1} parent=1 // loop_footer
      %s24 = sadd.s32 1, %s20
    $region7: #{tpu_custom_call.1} parent=1 // loop_footer_branch
      %19 = sbr.rel target = $region3
    $region8: #{tpu_custom_call.1} parent=1 // loop_exit
      _
    %576 = vsyncpa [#allocation3], 1
    %s577 = scalar_lea.sflag [#allocation3], 1
    %578 = vsyncpa %s577, 1
    %579 = vsyncpa [#allocation6], 1
    %580 = vsyncpa [#allocation4], 1
    %s581 = scalar_lea.sflag [#allocation4], 1
    %582 = vsyncpa %s581, 1
    %583 = vsyncpa [#allocation9], 1
    %s584 = scalar_lea.sflag [#allocation9], 1
    %585 = vsyncpa %s584, 1

</llo_original>
